<compile_context>
chip_gen: v7x
topology: tpu7x:2x2x1
jax: 0.10.0
libtpu: 0.0.40
codegen_flags: <defaults>
</compile_context>

<pallas_src>
import functools

import jax
import jax.numpy as jnp
from jax import lax
from jax.experimental import pallas as pl
from jax.experimental.pallas import tpu as pltpu


def _dwconv_kernel(x_ref, w_ref, b_ref, o_ref, *, C):
    """Depthwise 3x3 + folded BN + LeakyReLU(0.2) on one TH-row strip.

    x_ref: (1, H, W*C)   one batch element; resident across the H-tile grid axis
    w_ref: (9, W*C)      BN-scaled taps, tiled along lanes; W-border lanes zeroed
    b_ref: (1, W*C)      folded BN bias, tiled along lanes
    o_ref: (1, TH, W*C)  output strip (rows [h0, h0 + TH))
    """
    H = x_ref.shape[1]
    TH = o_ref.shape[1]
    WC = o_ref.shape[2]
    h0 = pl.multiple_of(pl.program_id(1) * TH, TH)

    f32 = jnp.float32
    # Hoisted: all 9 taps and the bias are loaded once per strip.
    w = w_ref[...].astype(f32)                                           # (9, WC)
    b = b_ref[...].astype(f32)                                           # (1, WC)

    # Rows [h0, h0+TH) plus a one-row halo above/below from the resident
    # full-H block.  Halo rows outside the image are zeroed (conv padding=1).
    xc = x_ref[0, pl.ds(h0, TH), :].astype(f32)                          # (TH, WC)
    up = x_ref[0, pl.ds(jnp.maximum(h0 - 1, 0), 1), :].astype(f32)       # (1, WC)
    dn = x_ref[0, pl.ds(jnp.minimum(h0 + TH, H - 1), 1), :].astype(f32)  # (1, WC)
    up = jnp.where(h0 > 0, up, 0.0)
    dn = jnp.where(h0 + TH < H, dn, 0.0)

    # H-shifted views: stick the halo row on, drop the far row.
    x_up = jnp.concatenate([up, xc[:TH - 1, :]], axis=0)   # source row h-1
    x_dn = jnp.concatenate([xc[1:, :], dn], axis=0)        # source row h+1

    def taps3(xk, k0):
        # A column shift is a lane rotation by +-C inside the folded (w, c)
        # lane axis (XLU slot).  Wrapped lanes carry garbage, but the matching
        # taps were zeroed in the wrapper, so no in-kernel masking is needed.
        xl = pltpu.roll(xk, C, axis=1)         # source column w-1
        xr = pltpu.roll(xk, WC - C, axis=1)    # source column w+1  (== roll by -C)
        return xl * w[k0] + xk * w[k0 + 1] + xr * w[k0 + 2]

    y = taps3(x_up, 0) + taps3(xc, 3) + taps3(x_dn, 6) + b      # conv + folded BN
    o_ref[0] = jnp.where(y > 0.0, y, 0.2 * y).astype(o_ref.dtype)  # LeakyReLU(0.2)


def _pick_row_tile(H, WC, row_block=None):
    """Largest multiple-of-8 row tile dividing H whose strip working set is modest."""
    if row_block is not None:
        if H % row_block != 0 or (row_block % 8 != 0 and row_block != H):
            raise ValueError("row_block must divide H and be a multiple of 8 (or == H)")
        return row_block
    if H % 8 != 0 or H <= 8:
        return H
    budget = 2 << 20        # ~2 MiB of f32 working values per strip (~8 live tiles)
    best, th = 8, 8
    while th <= H:
        if H % th == 0 and th * WC * 4 * 8 <= budget:
            best = th
        th += 8
    return best


def dwconv_nhwc(x_nhwc, weight, gamma, beta, running_mean, running_var,
                eps=1e-5, stride=1, row_block=None):
    """Depthwise 3x3 conv (groups == channels) + BN(eval) + LeakyReLU(0.2).

    x_nhwc: (N, H, W, C); weight: (C, 1, 3, 3) PyTorch depthwise layout.
    No HBM-side padding or transposes; halo handled in-kernel.
    """
    assert stride == 1, "only stride=1 implemented"  # TODO(synk): stride=2 via strided output index_map
    N, H, W, C = x_nhwc.shape
    WC = W * C

    # ---- fold BN (inference running stats) into the taps: conv(x,w)*s + b == conv(x, w*s) + b
    scale = gamma / jnp.sqrt(running_var + eps)                       # (C,)
    bias = beta - running_mean * scale                                # (C,)
    w_taps = jnp.transpose(weight[:, 0], (1, 2, 0)) * scale           # (3, 3, C)
    w_flat = jnp.tile(w_taps.reshape(9, C), (1, W))                   # (9, W*C), lane = w*C + c

    # Fold the W-border zero padding into the taps: kw=0 taps vanish where
    # column w-1 doesn't exist (lanes < C); kw=2 taps where w+1 doesn't exist.
    lane = jnp.arange(WC)[None, :]
    kw = (jnp.arange(9) % 3)[:, None]
    valid = jnp.where(kw == 0, lane >= C, jnp.where(kw == 2, lane < WC - C, True))
    w_flat = (w_flat * valid).astype(jnp.float32)
    b_flat = jnp.tile(bias, W).reshape(1, WC).astype(jnp.float32)

    # Lane-dense internal layout: fold (W, C) onto the lane axis (contiguous
    # flatten, free).  Lane-dense even for tiny C; works for any C.
    x_flat = x_nhwc.reshape(N, H, WC)

    TH = _pick_row_tile(H, WC, row_block)
    itemsize = x_nhwc.dtype.itemsize

    # VMEM: resident input image block (double-buffered across n) + output strip
    # (double-buffered) + params, with slack; keep under v7x's 32 MiB scoped default.
    need = 2 * (H * WC * itemsize + TH * WC * itemsize) + 10 * WC * 4
    vmem_limit = int(min(max(need + (4 << 20), 8 << 20), 32 << 20))

    kernel = functools.partial(_dwconv_kernel, C=C)
    out_flat = pl.pallas_call(
        kernel,
        out_shape=jax.ShapeDtypeStruct((N, H, WC), x_nhwc.dtype),
        grid_spec=pltpu.PrefetchScalarGridSpec(
            num_scalar_prefetch=0,
            grid=(N, H // TH),
            in_specs=[
                # Full-H image block; index_map ignores h, so it stays resident
                # in VMEM across the H tiles of one batch element (one DMA per n).
                pl.BlockSpec((1, H, WC), lambda n, h: (n, 0, 0)),
                pl.BlockSpec((9, WC), lambda n, h: (0, 0)),
                pl.BlockSpec((1, WC), lambda n, h: (0, 0)),
            ],
            out_specs=pl.BlockSpec((1, TH, WC), lambda n, h: (n, h, 0)),
        ),
        compiler_params=pltpu.CompilerParams(
            dimension_semantics=("parallel", "arbitrary"),
            vmem_limit_bytes=vmem_limit),
    )(x_flat, w_flat, b_flat)

    return out_flat.reshape(N, H, W, C)


def dwconv_forward(x_nchw, weight, gamma, beta, running_mean, running_var,
                   eps=1e-5, stride=1, row_block=None):
    """NCHW wrapper for PyTorch parity.  The two transposes here are pure layout
    plumbing and disappear if the surrounding pipeline is NHWC (use dwconv_nhwc)."""
    x_nhwc = jnp.transpose(x_nchw, (0, 2, 3, 1))
    y = dwconv_nhwc(x_nhwc, weight, gamma, beta, running_mean, running_var,
                    eps=eps, stride=stride, row_block=row_block)
    return jnp.transpose(y, (0, 3, 1, 2))


def _reference(x_nchw, weight, gamma, beta, running_mean, running_var, eps=1e-5):
    """Pure-JAX reference (depthwise conv via feature_group_count)."""
    C = x_nchw.shape[1]
    y = lax.conv_general_dilated(
        x_nchw.astype(jnp.float32), weight.astype(jnp.float32),
        window_strides=(1, 1), padding=((1, 1), (1, 1)),
        dimension_numbers=("NCHW", "OIHW", "NCHW"),
        feature_group_count=C)
    scale = (gamma / jnp.sqrt(running_var + eps)).reshape(1, C, 1, 1)
    bias = (beta - running_mean * gamma / jnp.sqrt(running_var + eps)).reshape(1, C, 1, 1)
    y = y * scale + bias
    return jnp.where(y > 0, y, 0.2 * y)


if __name__ == "__main__":
    key = jax.random.PRNGKey(0)
    k_x, k_w, k_g, k_b, k_m, k_v = jax.random.split(key, 6)

    N, C, H, W = 2, 4, 16, 16          # dw_channels == out_channels == 4
    x = jax.random.normal(k_x, (N, C, H, W), dtype=jnp.float32)

    # Conv2d(C, C, 3, 1, 1, groups=C, bias=False) -> weight (C, 1, 3, 3)
    weight = jax.random.normal(k_w, (C, 1, 3, 3), dtype=jnp.float32) * 0.3
    # BatchNorm2d(C) inference-mode running stats
    gamma = 1.0 + 0.1 * jax.random.normal(k_g, (C,), dtype=jnp.float32)
    beta = 0.1 * jax.random.normal(k_b, (C,), dtype=jnp.float32)
    running_mean = 0.1 * jax.random.normal(k_m, (C,), dtype=jnp.float32)
    running_var = jnp.abs(jax.random.normal(k_v, (C,), dtype=jnp.float32)) + 0.5

    ref = _reference(x, weight, gamma, beta, running_mean, running_var)

    # Default (auto) row tile.
    out = dwconv_forward(x, weight, gamma, beta, running_mean, running_var)
    out = jax.block_until_ready(out)
    assert out.shape == (N, C, H, W)
    assert jnp.allclose(out, ref, atol=1e-4, rtol=1e-4), "mismatch vs reference (auto TH)"

    # Force two H tiles to exercise the in-kernel halo across strip boundaries.
    out2 = dwconv_forward(x, weight, gamma, beta, running_mean, running_var, row_block=8)
    out2 = jax.block_until_ready(out2)
    assert jnp.allclose(out2, ref, atol=1e-4, rtol=1e-4), "mismatch vs reference (TH=8)"

    print("KERNEL_OK")
</pallas_src>

<mosaic_0001>
module attributes {stable_mosaic.version = 11 : i64} {
  func.func @_dwconv_kernel(%arg0: i32, %arg1: i32, %arg2: memref<1x16x64xf32, #tpu.memory_space<vmem>>, %arg3: memref<9x64xf32, #tpu.memory_space<vmem>>, %arg4: memref<1x64xf32, #tpu.memory_space<vmem>>, %arg5: memref<1x16x64xf32, #tpu.memory_space<vmem>>) attributes {dimension_semantics = [#tpu.dimension_semantics<parallel>, #tpu.dimension_semantics<arbitrary>], iteration_bounds = array<i64: 2, 1>, scalar_prefetch = 0 : i64, scratch_operands = 0 : i64, tpu.core_type = #tpu.core_type<tc>, window_params = [{transform_indices = @transform_0, window_bounds = array<i64: 1, 16, 64>}, {pipeline_mode = #tpu.pipeline_mode<synchronous>, transform_indices = @transform_1, window_bounds = array<i64: 9, 64>}, {pipeline_mode = #tpu.pipeline_mode<synchronous>, transform_indices = @transform_2, window_bounds = array<i64: 1, 64>}, {transform_indices = @transform_3, window_bounds = array<i64: 1, 16, 64>}]} {
    %c16_i32 = arith.constant 16 : i32
    %0 = arith.muli %arg1, %c16_i32 : i32
    %1 = tpu.assume_multiple %0, 16 : i32
    %c0 = arith.constant 0 : index
    %c0_0 = arith.constant 0 : index
    %2 = vector.load %arg3[%c0, %c0_0] : memref<9x64xf32, #tpu.memory_space<vmem>>, vector<9x64xf32>
    %c0_1 = arith.constant 0 : index
    %c0_2 = arith.constant 0 : index
    %3 = vector.load %arg4[%c0_1, %c0_2] : memref<1x64xf32, #tpu.memory_space<vmem>>, vector<1x64xf32>
    %c0_3 = arith.constant 0 : index
    %4 = arith.index_cast %1 : i32 to index
    %c0_4 = arith.constant 0 : index
    %5 = vector.load %arg2[%c0_3, %4, %c0_4] : memref<1x16x64xf32, #tpu.memory_space<vmem>>, vector<1x16x64xf32>
    %6 = vector.shape_cast %5 : vector<1x16x64xf32> to vector<16x64xf32>
    %c1_i32 = arith.constant 1 : i32
    %7 = arith.subi %1, %c1_i32 : i32
    %c0_i32 = arith.constant 0 : i32
    %8 = arith.maxsi %7, %c0_i32 : i32
    %c0_5 = arith.constant 0 : index
    %9 = arith.index_cast %8 : i32 to index
    %c0_6 = arith.constant 0 : index
    %10 = vector.load %arg2[%c0_5, %9, %c0_6] : memref<1x16x64xf32, #tpu.memory_space<vmem>>, vector<1x1x64xf32>
    %11 = vector.shape_cast %10 : vector<1x1x64xf32> to vector<1x64xf32>
    %c16_i32_7 = arith.constant 16 : i32
    %12 = arith.addi %1, %c16_i32_7 : i32
    %c15_i32 = arith.constant 15 : i32
    %13 = arith.minsi %12, %c15_i32 : i32
    %c0_8 = arith.constant 0 : index
    %14 = arith.index_cast %13 : i32 to index
    %c0_9 = arith.constant 0 : index
    %15 = vector.load %arg2[%c0_8, %14, %c0_9] : memref<1x16x64xf32, #tpu.memory_space<vmem>>, vector<1x1x64xf32>
    %16 = vector.shape_cast %15 : vector<1x1x64xf32> to vector<1x64xf32>
    %c0_i32_10 = arith.constant 0 : i32
    %17 = arith.cmpi sgt, %1, %c0_i32_10 : i32
    %cst = arith.constant 0.000000e+00 : f32
    %18 = vector.broadcast %cst : f32 to vector<1x64xf32>
    %19 = arith.select %17, %11, %18 : vector<1x64xf32>
    %c16_i32_11 = arith.constant 16 : i32
    %20 = arith.addi %1, %c16_i32_11 : i32
    %c16_i32_12 = arith.constant 16 : i32
    %21 = arith.cmpi slt, %20, %c16_i32_12 : i32
    %cst_13 = arith.constant 0.000000e+00 : f32
    %22 = vector.broadcast %cst_13 : f32 to vector<1x64xf32>
    %23 = arith.select %21, %16, %22 : vector<1x64xf32>
    %24 = vector.extract_strided_slice %6 {offsets = [0, 0], sizes = [15, 64], strides = [1, 1]} : vector<16x64xf32> to vector<15x64xf32>
    %25 = tpu.concatenate %19, %24 in 0 : vector<1x64xf32>, vector<15x64xf32> -> vector<16x64xf32>
    %26 = vector.extract_strided_slice %6 {offsets = [1, 0], sizes = [15, 64], strides = [1, 1]} : vector<16x64xf32> to vector<15x64xf32>
    %27 = tpu.concatenate %26, %23 in 0 : vector<15x64xf32>, vector<1x64xf32> -> vector<16x64xf32>
    %c4_i32 = arith.constant 4 : i32
    %28 = tpu.dynamic_rotate %25 by %c4_i32 dim 1 : vector<16x64xf32>, i32 -> vector<16x64xf32>
    %c60_i32 = arith.constant 60 : i32
    %29 = tpu.dynamic_rotate %25 by %c60_i32 dim 1 : vector<16x64xf32>, i32 -> vector<16x64xf32>
    %30 = vector.extract_strided_slice %2 {offsets = [0, 0], sizes = [1, 64], strides = [1, 1]} : vector<9x64xf32> to vector<1x64xf32>
    %31 = vector.shape_cast %30 : vector<1x64xf32> to vector<64xf32>
    %32 = vector.shape_cast %31 : vector<64xf32> to vector<1x64xf32>
    %33 = vector.broadcast %32 : vector<1x64xf32> to vector<16x64xf32>
    %34 = arith.mulf %28, %33 : vector<16x64xf32>
    %35 = vector.extract_strided_slice %2 {offsets = [1, 0], sizes = [1, 64], strides = [1, 1]} : vector<9x64xf32> to vector<1x64xf32>
    %36 = vector.shape_cast %35 : vector<1x64xf32> to vector<64xf32>
    %37 = vector.shape_cast %36 : vector<64xf32> to vector<1x64xf32>
    %38 = vector.broadcast %37 : vector<1x64xf32> to vector<16x64xf32>
    %39 = arith.mulf %25, %38 : vector<16x64xf32>
    %40 = arith.addf %34, %39 : vector<16x64xf32>
    %41 = vector.extract_strided_slice %2 {offsets = [2, 0], sizes = [1, 64], strides = [1, 1]} : vector<9x64xf32> to vector<1x64xf32>
    %42 = vector.shape_cast %41 : vector<1x64xf32> to vector<64xf32>
    %43 = vector.shape_cast %42 : vector<64xf32> to vector<1x64xf32>
    %44 = vector.broadcast %43 : vector<1x64xf32> to vector<16x64xf32>
    %45 = arith.mulf %29, %44 : vector<16x64xf32>
    %46 = arith.addf %40, %45 : vector<16x64xf32>
    %c4_i32_14 = arith.constant 4 : i32
    %47 = tpu.dynamic_rotate %6 by %c4_i32_14 dim 1 : vector<16x64xf32>, i32 -> vector<16x64xf32>
    %c60_i32_15 = arith.constant 60 : i32
    %48 = tpu.dynamic_rotate %6 by %c60_i32_15 dim 1 : vector<16x64xf32>, i32 -> vector<16x64xf32>
    %49 = vector.extract_strided_slice %2 {offsets = [3, 0], sizes = [1, 64], strides = [1, 1]} : vector<9x64xf32> to vector<1x64xf32>
    %50 = vector.shape_cast %49 : vector<1x64xf32> to vector<64xf32>
    %51 = vector.shape_cast %50 : vector<64xf32> to vector<1x64xf32>
    %52 = vector.broadcast %51 : vector<1x64xf32> to vector<16x64xf32>
    %53 = arith.mulf %47, %52 : vector<16x64xf32>
    %54 = vector.extract_strided_slice %2 {offsets = [4, 0], sizes = [1, 64], strides = [1, 1]} : vector<9x64xf32> to vector<1x64xf32>
    %55 = vector.shape_cast %54 : vector<1x64xf32> to vector<64xf32>
    %56 = vector.shape_cast %55 : vector<64xf32> to vector<1x64xf32>
    %57 = vector.broadcast %56 : vector<1x64xf32> to vector<16x64xf32>
    %58 = arith.mulf %6, %57 : vector<16x64xf32>
    %59 = arith.addf %53, %58 : vector<16x64xf32>
    %60 = vector.extract_strided_slice %2 {offsets = [5, 0], sizes = [1, 64], strides = [1, 1]} : vector<9x64xf32> to vector<1x64xf32>
    %61 = vector.shape_cast %60 : vector<1x64xf32> to vector<64xf32>
    %62 = vector.shape_cast %61 : vector<64xf32> to vector<1x64xf32>
    %63 = vector.broadcast %62 : vector<1x64xf32> to vector<16x64xf32>
    %64 = arith.mulf %48, %63 : vector<16x64xf32>
    %65 = arith.addf %59, %64 : vector<16x64xf32>
    %66 = arith.addf %46, %65 : vector<16x64xf32>
    %c4_i32_16 = arith.constant 4 : i32
    %67 = tpu.dynamic_rotate %27 by %c4_i32_16 dim 1 : vector<16x64xf32>, i32 -> vector<16x64xf32>
    %c60_i32_17 = arith.constant 60 : i32
    %68 = tpu.dynamic_rotate %27 by %c60_i32_17 dim 1 : vector<16x64xf32>, i32 -> vector<16x64xf32>
    %69 = vector.extract_strided_slice %2 {offsets = [6, 0], sizes = [1, 64], strides = [1, 1]} : vector<9x64xf32> to vector<1x64xf32>
    %70 = vector.shape_cast %69 : vector<1x64xf32> to vector<64xf32>
    %71 = vector.shape_cast %70 : vector<64xf32> to vector<1x64xf32>
    %72 = vector.broadcast %71 : vector<1x64xf32> to vector<16x64xf32>
    %73 = arith.mulf %67, %72 : vector<16x64xf32>
    %74 = vector.extract_strided_slice %2 {offsets = [7, 0], sizes = [1, 64], strides = [1, 1]} : vector<9x64xf32> to vector<1x64xf32>
    %75 = vector.shape_cast %74 : vector<1x64xf32> to vector<64xf32>
    %76 = vector.shape_cast %75 : vector<64xf32> to vector<1x64xf32>
    %77 = vector.broadcast %76 : vector<1x64xf32> to vector<16x64xf32>
    %78 = arith.mulf %27, %77 : vector<16x64xf32>
    %79 = arith.addf %73, %78 : vector<16x64xf32>
    %80 = vector.extract_strided_slice %2 {offsets = [8, 0], sizes = [1, 64], strides = [1, 1]} : vector<9x64xf32> to vector<1x64xf32>
    %81 = vector.shape_cast %80 : vector<1x64xf32> to vector<64xf32>
    %82 = vector.shape_cast %81 : vector<64xf32> to vector<1x64xf32>
    %83 = vector.broadcast %82 : vector<1x64xf32> to vector<16x64xf32>
    %84 = arith.mulf %68, %83 : vector<16x64xf32>
    %85 = arith.addf %79, %84 : vector<16x64xf32>
    %86 = arith.addf %66, %85 : vector<16x64xf32>
    %87 = vector.broadcast %3 : vector<1x64xf32> to vector<16x64xf32>
    %88 = arith.addf %86, %87 : vector<16x64xf32>
    %cst_18 = arith.constant 0.000000e+00 : f32
    %89 = vector.broadcast %cst_18 : f32 to vector<16x64xf32>
    %90 = arith.cmpf ogt, %88, %89 : vector<16x64xf32>
    %cst_19 = arith.constant 2.000000e-01 : f32
    %91 = vector.broadcast %cst_19 : f32 to vector<16x64xf32>
    %92 = arith.mulf %91, %88 : vector<16x64xf32>
    %93 = arith.select %90, %88, %92 : vector<16x64xi1>, vector<16x64xf32>
    %c0_20 = arith.constant 0 : index
    %c0_21 = arith.constant 0 : index
    %c0_22 = arith.constant 0 : index
    %94 = vector.load %arg5[%c0_20, %c0_21, %c0_22] : memref<1x16x64xf32, #tpu.memory_space<vmem>>, vector<1x16x64xf32>
    %95 = vector.shape_cast %94 : vector<1x16x64xf32> to vector<16x64xf32>
    %96 = vector.shape_cast %93 : vector<16x64xf32> to vector<1x16x64xf32>
    tpu.vector_store %arg5[%c0_20, %c0_21, %c0_22], %96 {strides = array<i32>} : memref<1x16x64xf32, #tpu.memory_space<vmem>>, vector<1x16x64xf32>,
    return
  }
  func.func @transform_0(%arg0: i32, %arg1: i32) -> (i32, i32, i32) {
    %c0_i32 = arith.constant 0 : i32
    %c0_i32_0 = arith.constant 0 : i32
    %c0_i32_1 = arith.constant 0 : i32
    return %arg0, %c0_i32, %c0_i32_0 : i32, i32, i32
  }
  func.func @transform_1(%arg0: i32, %arg1: i32) -> (i32, i32) {
    %c0_i32 = arith.constant 0 : i32
    %c0_i32_0 = arith.constant 0 : i32
    %c0_i32_1 = arith.constant 0 : i32
    return %c0_i32, %c0_i32_0 : i32, i32
  }
  func.func @transform_2(%arg0: i32, %arg1: i32) -> (i32, i32) {
    %c0_i32 = arith.constant 0 : i32
    %c0_i32_0 = arith.constant 0 : i32
    %c0_i32_1 = arith.constant 0 : i32
    return %c0_i32, %c0_i32_0 : i32, i32
  }
  func.func @transform_3(%arg0: i32, %arg1: i32) -> (i32, i32, i32) {
    %c0_i32 = arith.constant 0 : i32
    %c0_i32_0 = arith.constant 0 : i32
    return %arg0, %arg1, %c0_i32 : i32, i32, i32
  }
}

</mosaic_0001>

<llo_original>
// kernel: tpu_custom_call.1
$region0: #{tpu_custom_call.1}
  #allocation0 [shape = 'u32[]', space=smem, size = 0x4, offset = 0x4, fixed_abs, tag = 'smem constant byte address 0x4 - core index']
  #allocation1 [shape = 'u32[144,128]{1,0:T(1,128)}', space=vmem, size = 0x12000, scoped, tag = 'internal scratch']
  %s0 = inlined_call_operand.hbm [shape: f32[2,16,64], index: 0, kind: input, shape index: {}]
  %s1 = inlined_call_operand.hbm [shape: f32[9,64], index: 1, kind: input, shape index: {}]
  %s2 = inlined_call_operand.vmem [shape: f32[1,64], index: 2, kind: input, shape index: {}]
  %s3 = inlined_call_operand.hbm [shape: f32[2,16,64], index: 3, kind: output, shape index: {}]
  %s4 = sld [smem:[#allocation0]]
  $region53: #{tpu_custom_call.1} parent=0
    _
  %s6 = ssub.s32 1, %s4
  %s7 = scalar_select 0, %s6, %s4
  $region1: #{tpu_custom_call.1} parent=0
    #allocation2 [shape = 'u8[16384]{0}', space=vmem, size = 0x4000, scoped, tag = 'input window, operand 0']
    #allocation3 [shape = 's32[2]{0}', space=sflag, size = 0x8, scoped, tag = 'scoped memory for tpu_custom_call.1']
    #allocation4 [shape = 's32[2]{0}', space=sflag, size = 0x8, scoped, tag = 'scoped memory for tpu_custom_call.1']
    #allocation5 [shape = 'u8[8192]{0}', space=vmem, size = 0x2000, scoped, tag = 'input window, operand 1, single buffered']
    #allocation6 [shape = 's32[1]{0}', space=sflag, size = 0x4, scoped, tag = 'scoped memory for tpu_custom_call.1']
    #allocation7 [shape = 'u8[16384]{0}', space=vmem, size = 0x4000, scoped, tag = 'output window, operand 0']
    %8 = vsyncpa [#allocation3], 0
    %s9 = scalar_lea.sflag [#allocation3], 1
    %10 = vsyncpa %s9, 0
    %11 = vsyncpa [#allocation6], 0
    %12 = vsyncpa [#allocation4], 0
    %s13 = scalar_lea.sflag [#allocation4], 1
    %14 = vsyncpa %s13, 0
    loop: start=0, step=1, limit=4
    $region2: #{tpu_custom_call.1} parent=1 // loop_pre_header
      _
    $region3: #{tpu_custom_call.1} parent=1 // loop_header
      %s16 = sphi 0, %s20
      %p17 = scmp.ge.s32.totalorder %s16, 4
      %s23 = sphi 0, %s35
      %s24 = sphi 0, %s31
      %s25 = sphi 0, %s23
      %s26 = sphi 0, %s24
      %s27 = sphi 0, %s25
      %s28 = sphi 0, %s26
      %s38 = sphi 0, %s40
      %s41 = sphi 0, %s38
      %s42 = sphi 0, %s41
      %s58 = sphi 0, %s42
      %s62 = sphi 0, %s62
      %s64 = sphi 0, %s62
      %s65 = sphi 0, %s64
      %s79 = sphi 0, %s65
      %s83 = sphi 0, %s83
      %s85 = sphi 0, %s83
      %s86 = sphi 0, %s85
      %s100 = sphi 0, %s86
      %s108 = sphi 0, %s110
      %s111 = sphi 0, %s108
      %s112 = sphi 0, %s111
      %s128 = sphi 0, %s112
    $region4: #{tpu_custom_call.1} parent=1 // loop_header_branch
      %19 = sbr.rel (%p17) target = $region8
    $region5: #{tpu_custom_call.1} parent=1 // loop_body
      %s21 = ssub.s32 %s16, 1
      %s22 = ssub.s32 %s16, 2
      %s29 = sadd.s32 1, %s24
      %p30 = scmp.ge.s32.totalorder %s29, 1
      %s31 = scalar_select %p30, 0, %s29
      %s32 = sadd.s32 1, %s23
      %s33 = scalar_select %p30, %s32, %s23
      %p34 = scmp.ge.s32.totalorder %s33, 2
      %s35 = scalar_select %p34, 0, %s33
      %s36 = ssub.s32 %s23, %s35
      %p37 = scmp.eq.s32.totalorder %s36, 0
      %s39 = sadd.s32 %s38, 1
      %s40 = scalar_select %p37, %s38, %s39
      %p43 = pneg %p37
      %p44 = scmp.eq.s32.totalorder %s16, 1
      %p45 = por %p43, %p44
      %p46 = scmp.ne.s32.totalorder %s38, %s41
      %p47 = scmp.eq.s32.totalorder %s16, 0
      %p48 = por %p46, %p47
      %p49 = scmp.ne.s32.totalorder %s38, %s41
      %p50 = scmp.eq.s32.totalorder %s21, 1
      %p51 = por %p49, %p50
      %p52 = scmp.ne.s32.totalorder %s41, %s42
      %p53 = scmp.eq.s32.totalorder %s21, 0
      %p54 = por %p52, %p53
      %p55 = scmp.ne.s32.totalorder %s41, %s42
      %p56 = scmp.eq.s32.totalorder %s22, 1
      %p57 = por %p55, %p56
      %p59 = scmp.ne.s32.totalorder %s42, %s58
      %p60 = scmp.eq.s32.totalorder %s22, 0
      %p61 = por %p59, %p60
      %s63 = sadd.s32 %s62, 1
      %p66 = scmp.eq.s32.totalorder %s16, 1
      %p67 = scmp.ne.s32.totalorder %s62, %s64
      %p68 = scmp.eq.s32.totalorder %s16, 0
      %p69 = por %p67, %p68
      %p70 = scmp.ne.s32.totalorder %s62, %s64
      %p71 = scmp.eq.s32.totalorder %s21, 1
      %p72 = por %p70, %p71
      %p73 = scmp.ne.s32.totalorder %s64, %s65
      %p74 = scmp.eq.s32.totalorder %s21, 0
      %p75 = por %p73, %p74
      %p76 = scmp.ne.s32.totalorder %s64, %s65
      %p77 = scmp.eq.s32.totalorder %s22, 1
      %p78 = por %p76, %p77
      %p80 = scmp.ne.s32.totalorder %s65, %s79
      %p81 = scmp.eq.s32.totalorder %s22, 0
      %p82 = por %p80, %p81
      %s84 = sadd.s32 %s83, 1
      %p87 = scmp.eq.s32.totalorder %s16, 1
      %p88 = scmp.ne.s32.totalorder %s83, %s85
      %p89 = scmp.eq.s32.totalorder %s16, 0
      %p90 = por %p88, %p89
      %p91 = scmp.ne.s32.totalorder %s83, %s85
      %p92 = scmp.eq.s32.totalorder %s21, 1
      %p93 = por %p91, %p92
      %p94 = scmp.ne.s32.totalorder %s85, %s86
      %p95 = scmp.eq.s32.totalorder %s21, 0
      %p96 = por %p94, %p95
      %p97 = scmp.ne.s32.totalorder %s85, %s86
      %p98 = scmp.eq.s32.totalorder %s22, 1
      %p99 = por %p97, %p98
      %p101 = scmp.ne.s32.totalorder %s86, %s100
      %p102 = scmp.eq.s32.totalorder %s22, 0
      %p103 = por %p101, %p102
      %s104 = ssub.s32 %s23, %s35
      %s105 = ssub.s32 %s24, %s31
      %s106 = sor.u32 %s104, %s105
      %p107 = scmp.eq.s32.totalorder %s106, 0
      %s109 = sadd.s32 %s108, 1
      %s110 = scalar_select %p107, %s108, %s109
      %p113 = pneg %p107
      %p114 = scmp.eq.s32.totalorder %s16, 1
      %p115 = por %p113, %p114
      %p116 = scmp.ne.s32.totalorder %s108, %s111
      %p117 = scmp.eq.s32.totalorder %s16, 0
      %p118 = por %p116, %p117
      %p119 = scmp.ne.s32.totalorder %s108, %s111
      %p120 = scmp.eq.s32.totalorder %s21, 1
      %p121 = por %p119, %p120
      %p122 = scmp.ne.s32.totalorder %s111, %s112
      %p123 = scmp.eq.s32.totalorder %s21, 0
      %p124 = por %p122, %p123
      %p125 = scmp.ne.s32.totalorder %s111, %s112
      %p126 = scmp.eq.s32.totalorder %s22, 1
      %p127 = por %p125, %p126
      %p129 = scmp.ne.s32.totalorder %s112, %s128
      %p130 = scmp.eq.s32.totalorder %s22, 0
      %p131 = por %p129, %p130
      %p132 = scmp.le.s32.totalorder 1, %s16
      %p133 = scmp.lt.s32.totalorder %s16, 3
      %p134 = pnand %p132, %p133
      %p135 = pneg %p134
      // Predicated region
      $region9: #{tpu_custom_call.1} parent=5 // pred_check
        _
      $region10: #{tpu_custom_call.1} parent=5 // pred_check_branch
        %137 = sbr.rel (%p134) target = $region12
      $region11: #{tpu_custom_call.1} parent=5 // pred_region
        %s138 = ssub.s32 %s16, 1
        // Predicated region
        $region13: #{tpu_custom_call.1} parent=11 // pred_check
          %p139 = pneg %p75
        $region14: #{tpu_custom_call.1} parent=11 // pred_check_branch
          %141 = sbr.rel (%p139) target = $region16
        $region15: #{tpu_custom_call.1} parent=11 // pred_region
          %s143 = ssub.s32 256, 256
          %144 = vsyncadd [#allocation6], %s143
          %s145 = sshll.u32 [#allocation5], 4
          %s146 = int_to_ptr.vmem [resolvable:$true] %s145
          %151 = dma.hbm_to_vmem [thread:$0]  %s1, 256, %s146, [#allocation6], 128, 128, 8
        $region16: #{tpu_custom_call.1} parent=11 // pred_fallthru
          _
        // Predicated region
        $region17: #{tpu_custom_call.1} parent=11 // pred_check
          %p152 = pneg %p96
        $region18: #{tpu_custom_call.1} parent=11 // pred_check_branch
          %154 = sbr.rel (%p152) target = $region20
        $region19: #{tpu_custom_call.1} parent=11 // pred_region
          _
        $region20: #{tpu_custom_call.1} parent=11 // pred_fallthru
          _
      $region12: #{tpu_custom_call.1} parent=5 // pred_fallthru
        _
      %p155 = scmp.lt.s32.totalorder %s16, 2
      // Predicated region
      $region21: #{tpu_custom_call.1} parent=5 // pred_check
        %p156 = pneg %p155
      $region22: #{tpu_custom_call.1} parent=5 // pred_check_branch
        %158 = sbr.rel (%p156) target = $region24
      $region23: #{tpu_custom_call.1} parent=5 // pred_region
        // Predicated region
        $region25: #{tpu_custom_call.1} parent=23 // pred_check
          %p159 = pneg %p48
        $region26: #{tpu_custom_call.1} parent=23 // pred_check_branch
          %161 = sbr.rel (%p159) target = $region28
        $region27: #{tpu_custom_call.1} parent=23 // pred_region
          %s162 = sand.u32 %s38, 1
          %s163 = scalar_lea.sflag [#allocation3], %s162
          %s164 = sand.u32 %s38, 1
          %s165 = smul.addr %s164, 16
          %s166 = scalar_lea.vmem [#allocation2], %s165
          %s168 = ssub.s32 256, 256
          %169 = vsyncadd %s163, %s168
          %s170 = smul.addr %s23, 2
          %s171 = smul.addr %s170, 128
          %s172 = scalar_lea.hbm %s0, %s171
          %s173 = sshll.u32 %s166, 4
          %s174 = int_to_ptr.vmem [resolvable:$true] %s173
          %179 = dma.hbm_to_vmem [thread:$0]  %s172, 256, %s174, %s163, 128, 128, 8
        $region28: #{tpu_custom_call.1} parent=23 // pred_fallthru
          _
      $region24: #{tpu_custom_call.1} parent=5 // pred_fallthru
        _
      %p180 = scmp.le.s32.totalorder 1, %s16
      %p181 = scmp.lt.s32.totalorder %s16, 3
      %p182 = pnand %p180, %p181
      %p183 = pneg %p182
      // Predicated region
      $region29: #{tpu_custom_call.1} parent=5 // pred_check
        _
      $region30: #{tpu_custom_call.1} parent=5 // pred_check_branch
        %185 = sbr.rel (%p182) target = $region32
      $region31: #{tpu_custom_call.1} parent=5 // pred_region
        %s186 = ssub.s32 %s16, 1
        %s187 = sand.u32 %s41, 1
        %s188 = scalar_lea.sflag [#allocation3], %s187
        %s189 = sand.u32 %s41, 1
        %s190 = smul.addr %s189, 16
        %s191 = scalar_lea.vmem [#allocation2], %s190
        // Predicated region
        $region33: #{tpu_custom_call.1} parent=31 // pred_check
          %p192 = pneg %p54
        $region34: #{tpu_custom_call.1} parent=31 // pred_check_branch
          %194 = sbr.rel (%p192) target = $region36
        $region35: #{tpu_custom_call.1} parent=31 // pred_region
          %195 = dma.done %s188, 256
        $region36: #{tpu_custom_call.1} parent=31 // pred_fallthru
          _
        // Predicated region
        $region37: #{tpu_custom_call.1} parent=31 // pred_check
          %p196 = pneg %p75
        $region38: #{tpu_custom_call.1} parent=31 // pred_check_branch
          %198 = sbr.rel (%p196) target = $region40
        $region39: #{tpu_custom_call.1} parent=31 // pred_region
          %199 = dma.done [#allocation6], 256
        $region40: #{tpu_custom_call.1} parent=31 // pred_fallthru
          _
        %s200 = sand.u32 %s41, 1
        %s201 = scalar_lea.sflag [#allocation3], %s200
        %s202 = sand.u32 %s41, 1
        %s203 = smul.addr %s202, 16
        %s204 = scalar_lea.vmem [#allocation2], %s203
        %p205 = pneg %p54
        %p206 = pneg %p51
        %p207 = pneg %p75
        %p208 = pneg %p72
        %p209 = pneg %p96
        %p210 = pneg %p93
        %p211 = pneg %p124
        %p212 = pneg %p121
        %s213 = sand.u32 %s111, 1
        %s214 = scalar_lea.sflag [#allocation4], %s213
        %s215 = sand.u32 %s111, 1
        %s216 = smul.addr %s215, 16
        %s217 = scalar_lea.vmem [#allocation7], %s216
        %s218 = smul.u32 2, %s26
        %s219 = smul.u32 %s26, 16
        %v220 = vld [vmem:[#allocation5] sm:$0xff]
        %v221 = vld [vmem:[#allocation5 + $0x8] sm:$0x1]
        %v222 = vld [vmem:[%s2] sm:$0x1]
        %s223 = scalar_lea.vmem %s191, %s219 [#allocation2]
        %v224 = vld [vmem:[%s223] sm:$0xff]
        %v225 = vld [vmem:[%s223 + $0x8] sm:$0xff]
        %s226 = ssub.s32 %s219, 1
        %p227 = scmp.gt.s32.totalorder %s226, 0
        %s228 = scalar_select %p227, %s226, 0
        %s229 = scalar_lea.vmem %s191, %s228 [#allocation2]
        %v230 = vld [vmem:[%s229] sm:$0x1]
        %s231 = sadd.s32 %s219, 16
        %p232 = scmp.lt.s32.totalorder %s231, 15
        %s233 = scalar_select %p232, %s231, 15
        %s234 = scalar_lea.vmem %s191, %s233 [#allocation2]
        %v235 = vld [vmem:[%s234] sm:$0x1]
        %p236 = scmp.gt.s32.totalorder %s219, 0
        %s237 = scalar_select %p236, 1, 0
        %v238 = vstv %s237
        %vm239 = vcmp.eq.s32.totalorder %v238, 1
        %v240 = vsel %vm239, %v230, 0.0
        %p241 = scmp.lt.s32.totalorder %s231, 16
        %s242 = scalar_select %p241, 1, 0
        %v243 = vstv %s242
        %vm244 = vcmp.eq.s32.totalorder %v243, 1
        %v245 = vsel %vm244, %v235, 0.0
        %vm248 = vcmask 1040384
        %v249 = vrot.slane %v224, 7
        %v250 = vrot.slane %v225, 7
        %v251 = vsel %vm248, %v249, %v250
        %v254 = vsel %vm248, %v240, %v249
        %vm255 = vcmask 1046528
        %v256 = vrot.slane %v224, 1
        %v257 = vrot.slane %v225, 1
        %v258 = vsel %vm255, %v256, %v257
        %v262 = vrot.slane %v245, 1
        %v264 = vsel %vm255, %v257, %v262
        %vm265 = vcmask 1048064
        %266 = vrot.lane.b32.xlu0 %v254, 64
        %v267 = vpop.permute.xlu0 %266
        %v268 = vsel %vm265, %v267, %v254
        %269 = vrot.lane.b32.xlu0 %v251, 64
        %v270 = vpop.permute.xlu0 %269
        %v271 = vsel %vm265, %v270, %v251
        %272 = vrot.lane.b32.xlu0 %v268, 64
        %v273 = vpop.permute.xlu0 %272
        %274 = vrot.lane.b32.xlu0 %v271, 64
        %v275 = vpop.permute.xlu0 %274
        %v276 = vsel %vm265, %v273, %v254
        %v277 = vsel %vm265, %v275, %v251
        %v278 = vlaneseq
        %v279 = vshrl.u32 %v278, 7
        %v280 = vsub.s32 0, %v279
        %v281 = vrot.slane %v220, %v280
        %283 = vrot.lane.b32.xlu0 %v281, 60
        %v284 = vpop.permute.xlu0 %283
        %v286 = vmul.f32 %v276, %v284
        %v287 = vmul.f32 %v277, %v284
        %v288 = vlaneseq
        %v289 = vshrl.u32 %v288, 7
        %v290 = vsub.s32 1, %v289
        %v291 = vrot.slane %v220, %v290
        %v292 = vmul.f32 %v254, %v291
        %v293 = vmul.f32 %v251, %v291
        %296 = vrot.lane.b32.xlu0 %v292, 60
        %v297 = vpop.permute.xlu0 %296
        %298 = vrot.lane.b32.xlu0 %v293, 60
        %v299 = vpop.permute.xlu0 %298
        %v302 = vadd.f32 %v286, %v297
        %v303 = vadd.f32 %v287, %v299
        %v304 = vlaneseq
        %v305 = vshrl.u32 %v304, 7
        %v306 = vsub.s32 2, %v305
        %v307 = vrot.slane %v220, %v306
        %309 = vrot.lane.b32.xlu0 %v307, 4
        %v310 = vpop.permute.xlu0 %309
        %v312 = vmul.f32 %v276, %v310
        %v313 = vmul.f32 %v277, %v310
        %316 = vrot.lane.b32.xlu0 %v312, 56
        %v317 = vpop.permute.xlu0 %316
        %318 = vrot.lane.b32.xlu0 %v313, 56
        %v319 = vpop.permute.xlu0 %318
        %v322 = vadd.f32 %v302, %v317
        %v323 = vadd.f32 %v303, %v319
        %324 = vrot.lane.b32.xlu0 %v224, 64
        %v325 = vpop.permute.xlu0 %324
        %v326 = vsel %vm265, %v325, %v224
        %327 = vrot.lane.b32.xlu0 %v225, 64
        %v328 = vpop.permute.xlu0 %327
        %v329 = vsel %vm265, %v328, %v225
        %330 = vrot.lane.b32.xlu0 %v326, 64
        %v331 = vpop.permute.xlu0 %330
        %332 = vrot.lane.b32.xlu0 %v329, 64
        %v333 = vpop.permute.xlu0 %332
        %v334 = vsel %vm265, %v331, %v224
        %v335 = vsel %vm265, %v333, %v225
        %v336 = vlaneseq
        %v337 = vshrl.u32 %v336, 7
        %v338 = vsub.s32 3, %v337
        %v339 = vrot.slane %v220, %v338
        %341 = vrot.lane.b32.xlu0 %v339, 60
        %v342 = vpop.permute.xlu0 %341
        %v344 = vmul.f32 %v334, %v342
        %v345 = vmul.f32 %v335, %v342
        %v346 = vlaneseq
        %v347 = vshrl.u32 %v346, 7
        %v348 = vsub.s32 4, %v347
        %v349 = vrot.slane %v220, %v348
        %v350 = vmul.f32 %v224, %v349
        %v351 = vmul.f32 %v225, %v349
        %354 = vrot.lane.b32.xlu0 %v350, 60
        %v355 = vpop.permute.xlu0 %354
        %356 = vrot.lane.b32.xlu0 %v351, 60
        %v357 = vpop.permute.xlu0 %356
        %v360 = vadd.f32 %v344, %v355
        %v361 = vadd.f32 %v345, %v357
        %v362 = vlaneseq
        %v363 = vshrl.u32 %v362, 7
        %v364 = vsub.s32 5, %v363
        %v365 = vrot.slane %v220, %v364
        %367 = vrot.lane.b32.xlu0 %v365, 4
        %v368 = vpop.permute.xlu0 %367
        %v370 = vmul.f32 %v334, %v368
        %v371 = vmul.f32 %v335, %v368
        %374 = vrot.lane.b32.xlu0 %v370, 56
        %v375 = vpop.permute.xlu0 %374
        %376 = vrot.lane.b32.xlu0 %v371, 56
        %v377 = vpop.permute.xlu0 %376
        %v380 = vadd.f32 %v360, %v375
        %v381 = vadd.f32 %v361, %v377
        %v382 = vadd.f32 %v322, %v380
        %v383 = vadd.f32 %v323, %v381
        %384 = vrot.lane.b32.xlu0 %v258, 64
        %v385 = vpop.permute.xlu0 %384
        %v386 = vsel %vm265, %v385, %v258
        %387 = vrot.lane.b32.xlu0 %v264, 64
        %v388 = vpop.permute.xlu0 %387
        %v389 = vsel %vm265, %v388, %v264
        %390 = vrot.lane.b32.xlu0 %v386, 64
        %v391 = vpop.permute.xlu0 %390
        %392 = vrot.lane.b32.xlu0 %v389, 64
        %v393 = vpop.permute.xlu0 %392
        %v394 = vsel %vm265, %v391, %v258
        %v395 = vsel %vm265, %v393, %v264
        %v396 = vlaneseq
        %v397 = vshrl.u32 %v396, 7
        %v398 = vsub.s32 6, %v397
        %v399 = vrot.slane %v220, %v398
        %401 = vrot.lane.b32.xlu0 %v399, 60
        %v402 = vpop.permute.xlu0 %401
        %v404 = vmul.f32 %v394, %v402
        %v405 = vmul.f32 %v395, %v402
        %v406 = vlaneseq
        %v407 = vshrl.u32 %v406, 7
        %v408 = vsub.s32 7, %v407
        %v409 = vrot.slane %v220, %v408
        %v410 = vmul.f32 %v258, %v409
        %v411 = vmul.f32 %v264, %v409
        %414 = vrot.lane.b32.xlu0 %v410, 60
        %v415 = vpop.permute.xlu0 %414
        %416 = vrot.lane.b32.xlu0 %v411, 60
        %v417 = vpop.permute.xlu0 %416
        %v420 = vadd.f32 %v404, %v415
        %v421 = vadd.f32 %v405, %v417
        %v422 = vlaneseq
        %v423 = vshrl.u32 %v422, 7
        %v424 = vsub.s32 0, %v423
        %v425 = vrot.slane %v221, %v424
        %427 = vrot.lane.b32.xlu0 %v425, 4
        %v428 = vpop.permute.xlu0 %427
        %v430 = vmul.f32 %v394, %v428
        %v431 = vmul.f32 %v395, %v428
        %434 = vrot.lane.b32.xlu0 %v430, 56
        %v435 = vpop.permute.xlu0 %434
        %436 = vrot.lane.b32.xlu0 %v431, 56
        %v437 = vpop.permute.xlu0 %436
        %v440 = vadd.f32 %v420, %v435
        %v441 = vadd.f32 %v421, %v437
        %v442 = vadd.f32 %v382, %v440
        %v443 = vadd.f32 %v383, %v441
        %v445 = vlaneseq
        %v446 = vshrl.u32 %v445, 7
        %v447 = vsub.s32 0, %v446
        %v448 = vrot.slane %v222, %v447
        %449 = vrot.lane.b32.xlu0 %v448, 60
        %v450 = vpop.permute.xlu0 %449
        %v452 = vadd.f32 %v442, %v450
        %v453 = vadd.f32 %v443, %v450
        %vm454 = vcmp.gt.f32.partialorder %v452, 0.0
        %vm455 = vcmp.gt.f32.partialorder %v453, 0.0
        %v456 = vmul.f32 %v452, 0.2
        %v457 = vmul.f32 %v453, 0.2
        %v458 = vsel %vm454, %v452, %v456
        %v459 = vsel %vm455, %v453, %v457
        %462 = vrot.lane.b32.xlu0 %v458, 68
        %v463 = vpop.permute.xlu0 %462
        %464 = vrot.lane.b32.xlu0 %v459, 68
        %v465 = vpop.permute.xlu0 %464
        %vm468 = vcmask 523264
        %469 = vst.msk [vmem:[%s217] sm:$0xff] %vm468, %v463
        %470 = vst.msk [vmem:[%s217 + $0x8] sm:$0xff] %vm468, %v465
        %s471 = sand.u32 %s111, 1
        %s472 = scalar_lea.sflag [#allocation4], %s471
        %s473 = sand.u32 %s111, 1
        %s474 = smul.addr %s473, 16
        %s475 = scalar_lea.vmem [#allocation7], %s474
        // Predicated region
        $region41: #{tpu_custom_call.1} parent=31 // pred_check
          %p476 = pneg %p121
        $region42: #{tpu_custom_call.1} parent=31 // pred_check_branch
          %478 = sbr.rel (%p476) target = $region44
        $region43: #{tpu_custom_call.1} parent=31 // pred_region
          %s479 = smul.u32 2, %s26
          %s481 = ssub.s32 256, 256
          %482 = vsyncadd %s472, %s481
          %s483 = smul.addr %s25, 2
          %s484 = sadd.s32 %s479, %s483
          %s485 = smul.addr %s484, 128
          %s486 = scalar_lea.hbm %s3, %s485
          %s487 = sshll.u32 %s475, 4
          %s488 = int_to_ptr.vmem [resolvable:$true] %s487
          %493 = dma.vmem_to_hbm [thread:$0]  %s488, 256, %s486, %s472, 128, 128, 8
        $region44: #{tpu_custom_call.1} parent=31 // pred_fallthru
          _
      $region32: #{tpu_custom_call.1} parent=5 // pred_fallthru
        _
      %p494 = scmp.le.s32.totalorder 2, %s16
      // Predicated region
      $region45: #{tpu_custom_call.1} parent=5 // pred_check
        %p495 = pneg %p494
      $region46: #{tpu_custom_call.1} parent=5 // pred_check_branch
        %497 = sbr.rel (%p495) target = $region48
      $region47: #{tpu_custom_call.1} parent=5 // pred_region
        %s498 = ssub.s32 %s16, 2
        // Predicated region
        $region49: #{tpu_custom_call.1} parent=47 // pred_check
          %p499 = pneg %p127
        $region50: #{tpu_custom_call.1} parent=47 // pred_check_branch
          %501 = sbr.rel (%p499) target = $region52
        $region51: #{tpu_custom_call.1} parent=47 // pred_region
          %s502 = sand.u32 %s112, 1
          %s503 = scalar_lea.sflag [#allocation4], %s502
          %s504 = sand.u32 %s112, 1
          %s505 = smul.addr %s504, 16
          %s506 = scalar_lea.vmem [#allocation7], %s505
          %507 = dma.done %s503, 256
        $region52: #{tpu_custom_call.1} parent=47 // pred_fallthru
          _
      $region48: #{tpu_custom_call.1} parent=5 // pred_fallthru
        _
    $region6: #{tpu_custom_call.1} parent=1 // loop_footer
      %s20 = sadd.s32 1, %s16
    $region7: #{tpu_custom_call.1} parent=1 // loop_footer_branch
      %15 = sbr.rel target = $region3
    $region8: #{tpu_custom_call.1} parent=1 // loop_exit
      _
    %508 = vsyncpa [#allocation3], 1
    %s509 = scalar_lea.sflag [#allocation3], 1
    %510 = vsyncpa %s509, 1
    %511 = vsyncpa [#allocation6], 1
    %512 = vsyncpa [#allocation4], 1
    %s513 = scalar_lea.sflag [#allocation4], 1
    %514 = vsyncpa %s513, 1

</llo_original>
